<compile_context>
chip_gen: v7x
topology: tpu7x:2x2x1
jax: 0.10.0
libtpu: 0.0.40
codegen_flags: <defaults>
</compile_context>

<pallas_src>
import functools

import jax
import jax.numpy as jnp
from jax.experimental import pallas as pl
from jax.experimental.pallas import tpu as pltpu


def _round_up(n, m):
    return ((n + m - 1) // m) * m


def _bf16_eup_ok():
    # bf16-native VPU/EUP exists on v6e / v7x; v5e (and older) must keep f32
    # elementwise math (bf16 is confined to the MXU operands there).
    try:
        kind = jax.devices()[0].device_kind.lower()
    except Exception:
        return False
    return ("v6" in kind) or ("v7" in kind) or ("7x" in kind)


def full3net_kernel(x_ref, w1_ref, b1_ref, w2_ref, b2_ref, w3t_ref, b3_ref, o_ref,
                    *, bf16_eup):
    # x tile arrives batch-major [tb, 2]; a small in-kernel transpose (XLU slack)
    # puts the batch on the lane axis for the rest of the kernel.
    xT = x_ref[...].T                                     # [2, tb] f32
    w1 = w1_ref[...]                                      # [hid, 2] f32

    # Layer 1: K=2 contraction -> two broadcast multiply-adds on the VPU (MXU skipped).
    h1_pre = (w1[:, 0:1] * xT[0:1, :]
              + w1[:, 1:2] * xT[1:2, :]
              + b1_ref[...])                              # [hid, tb] f32
    if bf16_eup:
        h1 = jnp.tanh(h1_pre.astype(jnp.bfloat16))        # bf16 EUP: 2x denser tanh
    else:
        h1 = jnp.tanh(h1_pre)                             # v5e: f32 EUP only

    # Layer 2: hid x hid on the MXU, bf16 operands, f32 accumulation.
    h2_pre = jnp.dot(w2_ref[...], h1.astype(jnp.bfloat16),
                     preferred_element_type=jnp.float32) + b2_ref[...]
    if bf16_eup:
        h2 = jnp.tanh(h2_pre.astype(jnp.bfloat16))
    else:
        h2 = jnp.tanh(h2_pre)

    # Layer 3: single output row -> elementwise mul + sublane reduce (VPU + XLU).
    logits = (jnp.sum(w3t_ref[...] * h2.astype(jnp.float32), axis=0, keepdims=True)
              + b3_ref[...])                              # [1, tb] f32
    o_ref[...] = jax.nn.sigmoid(logits).astype(o_ref.dtype)


def full3net_forward(x, params, *, tb_max=2048, use_bf16_eup=None):
    """x: [B, 2] float32.  params: PyTorch-layout weights (w*: [out, in], b*: [out])."""
    if use_bf16_eup is None:
        use_bf16_eup = _bf16_eup_ok()

    B = x.shape[0]
    w1, b1 = params["w1"], params["b1"]   # [hid, 2], [hid]
    w2, b2 = params["w2"], params["b2"]   # [hid, hid], [hid]
    w3, b3 = params["w3"], params["b3"]   # [1, hid], [1]
    hid = w1.shape[0]

    # Pad hidden width to the f32 sublane tile (8): zero rows/cols are inert.
    hid_p = _round_up(max(hid, 8), 8)
    if hid_p != hid:
        w1 = jnp.zeros((hid_p, 2), w1.dtype).at[:hid].set(w1)
        b1 = jnp.zeros((hid_p,), b1.dtype).at[:hid].set(b1)
        w2 = jnp.zeros((hid_p, hid_p), w2.dtype).at[:hid, :hid].set(w2)
        b2 = jnp.zeros((hid_p,), b2.dtype).at[:hid].set(b2)
        w3 = jnp.zeros((1, hid_p), w3.dtype).at[:, :hid].set(w3)

    w2_bf16 = w2.astype(jnp.bfloat16)         # MXU operand in bf16, f32 accumulation
    b1c = b1.reshape(hid_p, 1)                # column biases broadcast over lanes
    b2c = b2.reshape(hid_p, 1)
    w3t = w3.reshape(hid_p, 1)
    b3c = b3.reshape(1, 1)

    # Lane-aligned batch tile; when B spans >1 lane tile, force >=2 grid steps so
    # the "parallel" batch axis can feed both v7x TensorCores.
    b128 = _round_up(B, 128)
    tb = min(tb_max, b128)
    if b128 > 128:
        tb = min(tb, _round_up(pl.cdiv(b128, 2), 128))
    b_pad = _round_up(B, tb)
    grid = (b_pad // tb,)

    # No transposed copy of x in the wrapper; pad along batch only if required.
    x_in = x if b_pad == B else jnp.pad(x, ((0, b_pad - B), (0, 0)))

    def resident(arr):
        # Full-array block + constant index map -> VMEM-resident for the whole grid.
        # TODO(synk): at large hid, single-buffer (at least) w2 via
        # pipeline_mode=pl.Buffered(1) to drop the second pipeline buffer.
        zeros = (0,) * arr.ndim
        return pl.BlockSpec(arr.shape, lambda i, _z=zeros: _z)

    # Explicit VMEM budget: double-buffered x/out tiles + (2x) resident weights +
    # ~6 f32 [hid, tb] intermediates, 1.5x headroom, clamped to 64 MiB (v7x phys).
    f32b = 4
    vmem_need = (2 * (tb * 2 * f32b + tb * f32b)
                 + 2 * (hid_p * 2 * f32b + 2 * hid_p * f32b
                        + hid_p * hid_p * 2 + hid_p * f32b + f32b)
                 + 6 * hid_p * tb * f32b)
    vmem_limit = int(min(max(32 << 20, 1.5 * vmem_need), 64 << 20))

    cost = pl.CostEstimate(
        flops=2 * b_pad * hid_p * (2 + hid_p + 1),
        transcendentals=b_pad * (2 * hid_p + 1),
        bytes_accessed=(4 * (b_pad * 2 + b_pad)                       # x + out
                        + 4 * (hid_p * 2 + 2 * hid_p + hid_p + 1)     # f32 params
                        + 2 * hid_p * hid_p),                         # bf16 w2
    )

    kernel = functools.partial(full3net_kernel, bf16_eup=use_bf16_eup)

    out_T = pl.pallas_call(
        kernel,
        out_shape=jax.ShapeDtypeStruct((1, b_pad), jnp.float32),
        grid=grid,
        in_specs=[
            pl.BlockSpec((tb, 2), lambda i: (i, 0)),       # x, batch-tiled
            resident(w1), resident(b1c),
            resident(w2_bf16), resident(b2c),
            resident(w3t), resident(b3c),
        ],
        out_specs=pl.BlockSpec((1, tb), lambda i: (0, i)),  # lane-dense output tile
        compiler_params=pltpu.CompilerParams(
            dimension_semantics=("parallel",),
            vmem_limit_bytes=vmem_limit,
        ),
        cost_estimate=cost,
    )(x_in, w1, b1c, w2_bf16, b2c, w3t, b3c)

    return out_T[:, :B].T                  # [B, 1]


def init_params(key, hid):
    """PyTorch nn.Linear-style init: U(-1/sqrt(fan_in), +1/sqrt(fan_in))."""
    ks = jax.random.split(key, 6)

    def linear_init(kw, kb, fan_in, fan_out):
        bound = 1.0 / jnp.sqrt(jnp.float32(fan_in))
        w = jax.random.uniform(kw, (fan_out, fan_in), jnp.float32, -bound, bound)
        b = jax.random.uniform(kb, (fan_out,), jnp.float32, -bound, bound)
        return w, b

    w1, b1 = linear_init(ks[0], ks[1], 2, hid)
    w2, b2 = linear_init(ks[2], ks[3], hid, hid)
    w3, b3 = linear_init(ks[4], ks[5], hid, 1)
    return {"w1": w1, "b1": b1, "w2": w2, "b2": b2, "w3": w3, "b3": b3}


def reference_forward(x, p):
    h1 = jnp.tanh(x @ p["w1"].T + p["b1"])
    h2 = jnp.tanh(h1 @ p["w2"].T + p["b2"])
    return jax.nn.sigmoid(h2 @ p["w3"].T + p["b3"])


if __name__ == "__main__":
    key = jax.random.PRNGKey(0)
    kx, kp = jax.random.split(key)

    batch, hid = 8, 32
    x = jax.random.normal(kx, (batch, 2), dtype=jnp.float32)
    params = init_params(kp, hid)

    bf16_eup = _bf16_eup_ok()
    out = jax.block_until_ready(full3net_forward(x, params, use_bf16_eup=bf16_eup))
    ref = reference_forward(x, params)

    # bf16 MXU operands (all chips) and bf16 tanh (v6e/v7x only) loosen the tolerance.
    atol = 3e-2 if bf16_eup else 1e-2
    assert out.shape == (batch, 1), out.shape
    assert jnp.allclose(out, ref, atol=atol, rtol=0.0), (
        f"mismatch: max abs diff {jnp.max(jnp.abs(out - ref))}"
    )
    print("KERNEL_OK")
</pallas_src>

<mosaic_0001>
module attributes {stable_mosaic.version = 11 : i64} {
  func.func @full3net_kernel(%arg0: i32, %arg1: memref<128x2xf32, #tpu.memory_space<vmem>>, %arg2: memref<32x2xf32, #tpu.memory_space<vmem>>, %arg3: memref<32x1xf32, #tpu.memory_space<vmem>>, %arg4: memref<32x32xbf16, #tpu.memory_space<vmem>>, %arg5: memref<32x1xf32, #tpu.memory_space<vmem>>, %arg6: memref<32x1xf32, #tpu.memory_space<vmem>>, %arg7: memref<1x1xf32, #tpu.memory_space<vmem>>, %arg8: memref<1x128xf32, #tpu.memory_space<vmem>>) attributes {dimension_semantics = [#tpu.dimension_semantics<parallel>], iteration_bounds = array<i64: 1>, scalar_prefetch = 0 : i64, scratch_operands = 0 : i64, tpu.core_type = #tpu.core_type<tc>, window_params = [{transform_indices = @transform_0, window_bounds = array<i64: 128, 2>}, {pipeline_mode = #tpu.pipeline_mode<synchronous>, transform_indices = @transform_1, window_bounds = array<i64: 32, 2>}, {pipeline_mode = #tpu.pipeline_mode<synchronous>, transform_indices = @transform_2, window_bounds = array<i64: 32, 1>}, {pipeline_mode = #tpu.pipeline_mode<synchronous>, transform_indices = @transform_3, window_bounds = array<i64: 32, 32>}, {pipeline_mode = #tpu.pipeline_mode<synchronous>, transform_indices = @transform_4, window_bounds = array<i64: 32, 1>}, {pipeline_mode = #tpu.pipeline_mode<synchronous>, transform_indices = @transform_5, window_bounds = array<i64: 32, 1>}, {pipeline_mode = #tpu.pipeline_mode<synchronous>, transform_indices = @transform_6, window_bounds = array<i64: 1, 1>}, {transform_indices = @transform_7, window_bounds = array<i64: 1, 128>}]} {
    %c0 = arith.constant 0 : index
    %c0_0 = arith.constant 0 : index
    %0 = vector.load %arg1[%c0, %c0_0] : memref<128x2xf32, #tpu.memory_space<vmem>>, vector<128x2xf32>
    %1 = tpu.transpose %0, [1, 0] : vector<128x2xf32> -> vector<2x128xf32>
    %c0_1 = arith.constant 0 : index
    %c0_2 = arith.constant 0 : index
    %2 = vector.load %arg2[%c0_1, %c0_2] : memref<32x2xf32, #tpu.memory_space<vmem>>, vector<32x2xf32>
    %3 = vector.extract_strided_slice %2 {offsets = [0, 0], sizes = [32, 1], strides = [1, 1]} : vector<32x2xf32> to vector<32x1xf32>
    %4 = vector.extract_strided_slice %1 {offsets = [0, 0], sizes = [1, 128], strides = [1, 1]} : vector<2x128xf32> to vector<1x128xf32>
    %5 = vector.broadcast %3 : vector<32x1xf32> to vector<32x128xf32>
    %6 = vector.broadcast %4 : vector<1x128xf32> to vector<32x128xf32>
    %7 = arith.mulf %5, %6 : vector<32x128xf32>
    %8 = vector.extract_strided_slice %2 {offsets = [0, 1], sizes = [32, 1], strides = [1, 1]} : vector<32x2xf32> to vector<32x1xf32>
    %9 = vector.extract_strided_slice %1 {offsets = [1, 0], sizes = [1, 128], strides = [1, 1]} : vector<2x128xf32> to vector<1x128xf32>
    %10 = vector.broadcast %8 : vector<32x1xf32> to vector<32x128xf32>
    %11 = vector.broadcast %9 : vector<1x128xf32> to vector<32x128xf32>
    %12 = arith.mulf %10, %11 : vector<32x128xf32>
    %13 = arith.addf %7, %12 : vector<32x128xf32>
    %c0_3 = arith.constant 0 : index
    %c0_4 = arith.constant 0 : index
    %14 = vector.load %arg3[%c0_3, %c0_4] : memref<32x1xf32, #tpu.memory_space<vmem>>, vector<32x1xf32>
    %15 = vector.broadcast %14 : vector<32x1xf32> to vector<32x128xf32>
    %16 = arith.addf %13, %15 : vector<32x128xf32>
    %17 = math.tanh %16 : vector<32x128xf32>
    %c0_5 = arith.constant 0 : index
    %c0_6 = arith.constant 0 : index
    %18 = vector.load %arg4[%c0_5, %c0_6] : memref<32x32xbf16, #tpu.memory_space<vmem>>, vector<32x32xbf16>
    %19 = arith.truncf %17 : vector<32x128xf32> to vector<32x128xbf16>
    %cst = arith.constant dense<0.000000e+00> : vector<32x128xf32>
    %20 = tpu.matmul %18, %19, %cst {dimension_numbers = #tpu.dot_dimension_numbers<[1], [0], [0], [1], [0, 0, 1, 1], [], []>} : vector<32x32xbf16>, vector<32x128xbf16>, vector<32x128xf32> -> vector<32x128xf32>
    %c0_7 = arith.constant 0 : index
    %c0_8 = arith.constant 0 : index
    %21 = vector.load %arg5[%c0_7, %c0_8] : memref<32x1xf32, #tpu.memory_space<vmem>>, vector<32x1xf32>
    %22 = vector.broadcast %21 : vector<32x1xf32> to vector<32x128xf32>
    %23 = arith.addf %20, %22 : vector<32x128xf32>
    %24 = math.tanh %23 : vector<32x128xf32>
    %c0_9 = arith.constant 0 : index
    %c0_10 = arith.constant 0 : index
    %25 = vector.load %arg6[%c0_9, %c0_10] : memref<32x1xf32, #tpu.memory_space<vmem>>, vector<32x1xf32>
    %26 = vector.broadcast %25 : vector<32x1xf32> to vector<32x128xf32>
    %27 = arith.mulf %26, %24 : vector<32x128xf32>
    %cst_11 = arith.constant dense<0.000000e+00> : vector<128xf32>
    %28 = vector.multi_reduction <add>, %27, %cst_11 [0] : vector<32x128xf32> to vector<128xf32>
    %29 = vector.shape_cast %28 : vector<128xf32> to vector<1x128xf32>
    %c0_12 = arith.constant 0 : index
    %c0_13 = arith.constant 0 : index
    %30 = vector.load %arg7[%c0_12, %c0_13] : memref<1x1xf32, #tpu.memory_space<vmem>>, vector<1x1xf32>
    %31 = vector.broadcast %30 : vector<1x1xf32> to vector<1x128xf32>
    %32 = arith.addf %29, %31 : vector<1x128xf32>
    %33 = arith.negf %32 : vector<1x128xf32>
    %34 = math.exp %33 : vector<1x128xf32>
    %cst_14 = arith.constant 1.000000e+00 : f32
    %35 = vector.broadcast %cst_14 : f32 to vector<1x128xf32>
    %36 = arith.addf %35, %34 : vector<1x128xf32>
    %37 = arith.divf %35, %36 : vector<1x128xf32>
    %c0_15 = arith.constant 0 : index
    %c0_16 = arith.constant 0 : index
    %38 = vector.load %arg8[%c0_15, %c0_16] : memref<1x128xf32, #tpu.memory_space<vmem>>, vector<1x128xf32>
    tpu.vector_store %arg8[%c0_15, %c0_16], %37 {strides = array<i32>} : memref<1x128xf32, #tpu.memory_space<vmem>>, vector<1x128xf32>,
    return
  }
  func.func @transform_0(%arg0: i32) -> (i32, i32) {
    %c0_i32 = arith.constant 0 : i32
    %c0_i32_0 = arith.constant 0 : i32
    return %arg0, %c0_i32 : i32, i32
  }
  func.func @transform_1(%arg0: i32) -> (i32, i32) {
    %c0_i32 = arith.constant 0 : i32
    %c0_i32_0 = arith.constant 0 : i32
    %c0_i32_1 = arith.constant 0 : i32
    return %c0_i32, %c0_i32_0 : i32, i32
  }
  func.func @transform_2(%arg0: i32) -> (i32, i32) {
    %c0_i32 = arith.constant 0 : i32
    %c0_i32_0 = arith.constant 0 : i32
    %c0_i32_1 = arith.constant 0 : i32
    return %c0_i32, %c0_i32_0 : i32, i32
  }
  func.func @transform_3(%arg0: i32) -> (i32, i32) {
    %c0_i32 = arith.constant 0 : i32
    %c0_i32_0 = arith.constant 0 : i32
    %c0_i32_1 = arith.constant 0 : i32
    return %c0_i32, %c0_i32_0 : i32, i32
  }
  func.func @transform_4(%arg0: i32) -> (i32, i32) {
    %c0_i32 = arith.constant 0 : i32
    %c0_i32_0 = arith.constant 0 : i32
    %c0_i32_1 = arith.constant 0 : i32
    return %c0_i32, %c0_i32_0 : i32, i32
  }
  func.func @transform_5(%arg0: i32) -> (i32, i32) {
    %c0_i32 = arith.constant 0 : i32
    %c0_i32_0 = arith.constant 0 : i32
    %c0_i32_1 = arith.constant 0 : i32
    return %c0_i32, %c0_i32_0 : i32, i32
  }
  func.func @transform_6(%arg0: i32) -> (i32, i32) {
    %c0_i32 = arith.constant 0 : i32
    %c0_i32_0 = arith.constant 0 : i32
    %c0_i32_1 = arith.constant 0 : i32
    return %c0_i32, %c0_i32_0 : i32, i32
  }
  func.func @transform_7(%arg0: i32) -> (i32, i32) {
    %c0_i32 = arith.constant 0 : i32
    %c0_i32_0 = arith.constant 0 : i32
    return %c0_i32, %arg0 : i32, i32
  }
}

</mosaic_0001>

<llo_original>
// kernel: tpu_custom_call.1
$region0: #{tpu_custom_call.1}
  #allocation0 [shape = 'u32[]', space=smem, size = 0x4, offset = 0x4, fixed_abs, tag = 'smem constant byte address 0x4 - core index']
  #allocation1 [shape = 'u32[144,128]{1,0:T(1,128)}', space=vmem, size = 0x12000, scoped, tag = 'internal scratch']
  #allocation2 [shape = 'f32[1,1]{1,0:T(1,128)S(1)}', space=vmem, size = 0x200, scoped, tag = 'scoped memory for tpu_custom_call.1']
  %s0 = inlined_call_operand.vmem [shape: f32[128,2], index: 0, kind: input, shape index: {}]
  %s1 = inlined_call_operand.vmem [shape: f32[32,2], index: 1, kind: input, shape index: {}]
  %s2 = inlined_call_operand.vmem [shape: f32[32,1], index: 2, kind: input, shape index: {}]
  %s3 = inlined_call_operand.vmem [shape: bf16[32,32], index: 3, kind: input, shape index: {}]
  %s4 = inlined_call_operand.vmem [shape: f32[32,1], index: 4, kind: input, shape index: {}]
  %s5 = inlined_call_operand.vmem [shape: f32[32,1], index: 5, kind: input, shape index: {}]
  %s6 = inlined_call_operand.<no memory space> [shape: f32[1,1], index: 6, kind: input, shape index: {}]
  %s7 = inlined_call_operand.hbm [shape: f32[1,128], index: 7, kind: output, shape index: {}]
  %s8 = sld [smem:[#allocation0]]
  $region38: #{tpu_custom_call.1} parent=0
    _
  %s10 = ssub.s32 1, %s8
  %s11 = scalar_select 0, %s10, %s8
  %v12 = vstv %s6
  %13 = vst [vmem:[#allocation2] sm:$0x1] %v12
  $region1: #{tpu_custom_call.1} parent=0
    #allocation3 [shape = 'u8[512]{0}', space=vmem, size = 0x400, scoped, tag = 'output window, operand 0, single buffered']
    #allocation4 [shape = 's32[1]{0}', space=sflag, size = 0x4, scoped, tag = 'scoped memory for tpu_custom_call.1']
    %14 = vsyncpa [#allocation4], 0
    // Predicated region
    $region2: #{tpu_custom_call.1} parent=1 // pred_check
      _
    $region3: #{tpu_custom_call.1} parent=1 // pred_check_branch
      %16 = sbr.rel (0) target = $region5
    $region4: #{tpu_custom_call.1} parent=1 // pred_region
      _
    $region5: #{tpu_custom_call.1} parent=1 // pred_fallthru
      _
    // Predicated region
    $region6: #{tpu_custom_call.1} parent=1 // pred_check
      _
    $region7: #{tpu_custom_call.1} parent=1 // pred_check_branch
      %18 = sbr.rel (0) target = $region9
    $region8: #{tpu_custom_call.1} parent=1 // pred_region
      _
    $region9: #{tpu_custom_call.1} parent=1 // pred_fallthru
      _
    // Predicated region
    $region10: #{tpu_custom_call.1} parent=1 // pred_check
      _
    $region11: #{tpu_custom_call.1} parent=1 // pred_check_branch
      %20 = sbr.rel (0) target = $region13
    $region12: #{tpu_custom_call.1} parent=1 // pred_region
      _
    $region13: #{tpu_custom_call.1} parent=1 // pred_fallthru
      _
    // Predicated region
    $region14: #{tpu_custom_call.1} parent=1 // pred_check
      _
    $region15: #{tpu_custom_call.1} parent=1 // pred_check_branch
      %22 = sbr.rel (0) target = $region17
    $region16: #{tpu_custom_call.1} parent=1 // pred_region
      _
    $region17: #{tpu_custom_call.1} parent=1 // pred_fallthru
      _
    // Predicated region
    $region18: #{tpu_custom_call.1} parent=1 // pred_check
      _
    $region19: #{tpu_custom_call.1} parent=1 // pred_check_branch
      %24 = sbr.rel (0) target = $region21
    $region20: #{tpu_custom_call.1} parent=1 // pred_region
      _
    $region21: #{tpu_custom_call.1} parent=1 // pred_fallthru
      _
    // Predicated region
    $region22: #{tpu_custom_call.1} parent=1 // pred_check
      _
    $region23: #{tpu_custom_call.1} parent=1 // pred_check_branch
      %26 = sbr.rel (0) target = $region25
    $region24: #{tpu_custom_call.1} parent=1 // pred_region
      _
    $region25: #{tpu_custom_call.1} parent=1 // pred_fallthru
      _
    // Predicated region
    $region26: #{tpu_custom_call.1} parent=1 // pred_check
      _
    $region27: #{tpu_custom_call.1} parent=1 // pred_check_branch
      %28 = sbr.rel (0) target = $region29
    $region28: #{tpu_custom_call.1} parent=1 // pred_region
      _
    $region29: #{tpu_custom_call.1} parent=1 // pred_fallthru
      _
    %v30 = vld [vmem:[%s0] sm:$0xff]
    %v31 = vld [vmem:[%s0 + $0x8] sm:$0xff]
    %v32 = vld [vmem:[%s0 + $0x10] sm:$0xff]
    %v33 = vld [vmem:[%s0 + $0x18] sm:$0xff]
    %v34 = vld [vmem:[%s0 + $0x20] sm:$0xff]
    %v35 = vld [vmem:[%s0 + $0x28] sm:$0xff]
    %v36 = vld [vmem:[%s0 + $0x30] sm:$0xff]
    %v37 = vld [vmem:[%s0 + $0x38] sm:$0xff]
    %v38 = vld [vmem:[%s0 + $0x40] sm:$0xff]
    %v39 = vld [vmem:[%s0 + $0x48] sm:$0xff]
    %v40 = vld [vmem:[%s0 + $0x50] sm:$0xff]
    %v41 = vld [vmem:[%s0 + $0x58] sm:$0xff]
    %v42 = vld [vmem:[%s0 + $0x60] sm:$0xff]
    %v43 = vld [vmem:[%s0 + $0x68] sm:$0xff]
    %v44 = vld [vmem:[%s0 + $0x70] sm:$0xff]
    %v45 = vld [vmem:[%s0 + $0x78] sm:$0xff]
    %46 = vxpose.xlu0.b32.start [1/16] %v30, 128
    %47 = vxpose.xlu0.b32.cont [2/16] %v31, 128
    %48 = vxpose.xlu0.b32.cont [3/16] %v32, 128
    %49 = vxpose.xlu0.b32.cont [4/16] %v33, 128
    %50 = vxpose.xlu0.b32.cont [5/16] %v34, 128
    %51 = vxpose.xlu0.b32.cont [6/16] %v35, 128
    %52 = vxpose.xlu0.b32.cont [7/16] %v36, 128
    %53 = vxpose.xlu0.b32.cont [8/16] %v37, 128
    %54 = vxpose.xlu0.b32.cont [9/16] %v38, 128
    %55 = vxpose.xlu0.b32.cont [10/16] %v39, 128
    %56 = vxpose.xlu0.b32.cont [11/16] %v40, 128
    %57 = vxpose.xlu0.b32.cont [12/16] %v41, 128
    %58 = vxpose.xlu0.b32.cont [13/16] %v42, 128
    %59 = vxpose.xlu0.b32.cont [14/16] %v43, 128
    %60 = vxpose.xlu0.b32.cont [15/16] %v44, 128
    %61 = vxpose.xlu0.b32.end [16/16] %v45, 128
    %v62 = vpop.trf.xlu0
    %v63 = vpop.trf.xlu0
    %v64 = vpop.trf.xlu0
    %v65 = vpop.trf.xlu0
    %v66 = vpop.trf.xlu0
    %v67 = vpop.trf.xlu0
    %v68 = vpop.trf.xlu0
    %v69 = vpop.trf.xlu0
    %v70 = vpop.trf.xlu0
    %v71 = vpop.trf.xlu0
    %v72 = vpop.trf.xlu0
    %v73 = vpop.trf.xlu0
    %v74 = vpop.trf.xlu0
    %v75 = vpop.trf.xlu0
    %v76 = vpop.trf.xlu0
    %v77 = vpop.trf.xlu0
    %v78 = vld [vmem:[%s1] sm:$0xff]
    %v79 = vld [vmem:[%s1 + $0x8] sm:$0xff]
    %v80 = vld [vmem:[%s1 + $0x10] sm:$0xff]
    %v81 = vld [vmem:[%s1 + $0x18] sm:$0xff]
    %83 = vset.pattern.permute.xlu0 0
    %84 = vperm.xlu0 %83, %v78
    %v85 = vpop.permute.xlu0 %84
    %88 = vset.pattern.permute.xlu0 0
    %89 = vperm.xlu0 %88, %v79
    %v90 = vpop.permute.xlu0 %89
    %93 = vset.pattern.permute.xlu0 0
    %94 = vperm.xlu0 %93, %v80
    %v95 = vpop.permute.xlu0 %94
    %98 = vset.pattern.permute.xlu0 0
    %99 = vperm.xlu0 %98, %v81
    %v100 = vpop.permute.xlu0 %99
    %v102 = vlaneseq
    %v103 = vshrl.u32 %v102, 7
    %v104 = vsub.s32 0, %v103
    %v105 = vrot.slane %v62, %v104
    %v106 = vmul.f32 %v85, %v105
    %v107 = vmul.f32 %v90, %v105
    %v108 = vmul.f32 %v95, %v105
    %v109 = vmul.f32 %v100, %v105
    %110 = vset.pattern.permute.xlu0 1
    %111 = vperm.xlu0 %110, %v78
    %v112 = vpop.permute.xlu0 %111
    %114 = vset.pattern.permute.xlu0 1
    %115 = vperm.xlu0 %114, %v79
    %v116 = vpop.permute.xlu0 %115
    %118 = vset.pattern.permute.xlu0 1
    %119 = vperm.xlu0 %118, %v80
    %v120 = vpop.permute.xlu0 %119
    %122 = vset.pattern.permute.xlu0 1
    %123 = vperm.xlu0 %122, %v81
    %v124 = vpop.permute.xlu0 %123
    %v126 = vlaneseq
    %v127 = vshrl.u32 %v126, 7
    %v128 = vsub.s32 1, %v127
    %v129 = vrot.slane %v62, %v128
    %v130 = vmul.f32 %v112, %v129
    %v131 = vmul.f32 %v116, %v129
    %v132 = vmul.f32 %v120, %v129
    %v133 = vmul.f32 %v124, %v129
    %v134 = vadd.f32 %v106, %v130
    %v135 = vadd.f32 %v107, %v131
    %v136 = vadd.f32 %v108, %v132
    %v137 = vadd.f32 %v109, %v133
    %v138 = vld [vmem:[%s2] sm:$0xff]
    %v139 = vld [vmem:[%s2 + $0x8] sm:$0xff]
    %v140 = vld [vmem:[%s2 + $0x10] sm:$0xff]
    %v141 = vld [vmem:[%s2 + $0x18] sm:$0xff]
    %143 = vset.pattern.permute.xlu0 0
    %144 = vperm.xlu0 %143, %v138
    %v145 = vpop.permute.xlu0 %144
    %148 = vset.pattern.permute.xlu0 0
    %149 = vperm.xlu0 %148, %v139
    %v150 = vpop.permute.xlu0 %149
    %153 = vset.pattern.permute.xlu0 0
    %154 = vperm.xlu0 %153, %v140
    %v155 = vpop.permute.xlu0 %154
    %158 = vset.pattern.permute.xlu0 0
    %159 = vperm.xlu0 %158, %v141
    %v160 = vpop.permute.xlu0 %159
    %v162 = vadd.f32 %v134, %v145
    %v163 = vadd.f32 %v135, %v150
    %v164 = vadd.f32 %v136, %v155
    %v165 = vadd.f32 %v137, %v160
    %v166 = vtanh.pop %v162
    %v167 = vtanh.pop %v163
    %v168 = vtanh.pop %v164
    %v169 = vtanh.pop %v165
    %v170 = vld [vmem:[%s3] sm:$0xf]
    %v171 = vld [vmem:[%s3 + $0x4] sm:$0xf]
    %v172 = vld [vmem:[%s3 + $0x8] sm:$0xf]
    %v173 = vld [vmem:[%s3 + $0xc] sm:$0xf]
    %v174 = vpack.c.bf16 %v167, %v166
    %v175 = vpack.c.bf16 %v169, %v168
    %v176 = vld [vmem:[%s4] sm:$0xff]
    %v177 = vld [vmem:[%s4 + $0x8] sm:$0xff]
    %v178 = vld [vmem:[%s4 + $0x10] sm:$0xff]
    %v179 = vld [vmem:[%s4 + $0x18] sm:$0xff]
    %181 = vset.pattern.permute.xlu0 0
    %182 = vperm.xlu0 %181, %v176
    %v183 = vpop.permute.xlu0 %182
    %186 = vset.pattern.permute.xlu0 0
    %187 = vperm.xlu0 %186, %v177
    %v188 = vpop.permute.xlu0 %187
    %191 = vset.pattern.permute.xlu0 0
    %192 = vperm.xlu0 %191, %v178
    %v193 = vpop.permute.xlu0 %192
    %196 = vset.pattern.permute.xlu0 0
    %197 = vperm.xlu0 %196, %v179
    %v198 = vpop.permute.xlu0 %197
    %v204 = vunpack.c.l.b16 %v170
    %v205 = vunpack.c.l.b16 %v171
    %v206 = vunpack.c.l.b16 %v172
    %v207 = vunpack.c.l.b16 %v173
    %v208 = vpack.c.b16 %v205, %v204
    %v209 = vpack.c.b16 %v207, %v206
    %vm210 = vcmask 261120
    %v212 = vsel %vm210, %v208, 0
    %v215 = vsel %vm210, %v209, 0
    %217 = vmatprep.subr.bf16.mxu0 0
    %218 = vmatpush1.bf16.msra.mxu0 %v174
    %219 = vmatprep.subr.bf16.mxu0 0
    %220 = vmatpush1.bf16.msra.mxu0 %v175
    %221 = vmatprep.subr.bf16.mxu0 0
    %222 = vmatpush1.bf16.msra.mxu0 0
    %223 = vmatprep.subr.bf16.mxu0 0
    %224 = vmatpush1.bf16.msra.mxu0 0
    %225 = vmatprep.subr.bf16.mxu0 0
    %226 = vmatpush1.bf16.msra.mxu0 0
    %227 = vmatprep.subr.bf16.mxu0 0
    %228 = vmatpush1.bf16.msra.mxu0 0
    %229 = vmatprep.subr.bf16.mxu0 0
    %230 = vmatpush1.bf16.msra.mxu0 0
    %231 = vmatprep.subr.bf16.mxu0 0
    %232 = vmatpush1.bf16.msra.mxu0 0
    %233 = vmatprep.subr.bf16.mxu0 0
    %234 = vmatpush1.bf16.msra.mxu0 0
    %235 = vmatprep.subr.bf16.mxu0 0
    %236 = vmatpush1.bf16.msra.mxu0 0
    %237 = vmatprep.subr.bf16.mxu0 0
    %238 = vmatpush1.bf16.msra.mxu0 0
    %239 = vmatprep.subr.bf16.mxu0 0
    %240 = vmatpush1.bf16.msra.mxu0 0
    %241 = vmatprep.subr.bf16.mxu0 0
    %242 = vmatpush1.bf16.msra.mxu0 0
    %243 = vmatprep.subr.bf16.mxu0 0
    %244 = vmatpush1.bf16.msra.mxu0 0
    %245 = vmatprep.subr.bf16.mxu0 0
    %246 = vmatpush1.bf16.msra.mxu0 0
    %247 = vmatprep.subr.bf16.mxu0 0
    %248 = vmatpush1.bf16.msra.mxu0 0
    %249 = vmatprep.mubr.bf16.mxu0 0
    %250 = vmatmul.mubr.bf16.gmra.mrb[0].mxu0 %v212
    %v251 = vpop.f32.mrb[0].mxu0
    %v252 = vadd.f32 %v183, %v251
    %v253 = vpop.f32.mrb[0].mxu0
    %v254 = vpop.f32.mrb[0].mxu0
    %v255 = vadd.f32 %v188, %v254
    %v256 = vpop.f32.mrb[0].mxu0
    %257 = vmatprep.mubr.bf16.mxu0 0
    %258 = vmatmul.mubr.bf16.gmra.mrb[0].mxu0 %v215
    %v259 = vpop.f32.mrb[0].mxu0
    %v260 = vadd.f32 %v193, %v259
    %v261 = vpop.f32.mrb[0].mxu0
    %v262 = vpop.f32.mrb[0].mxu0
    %v263 = vadd.f32 %v198, %v262
    %v264 = vpop.f32.mrb[0].mxu0
    %265 = vdwg.mxu0
    %v266 = vtanh.pop %v252
    %v267 = vtanh.pop %v255
    %v268 = vtanh.pop %v260
    %v269 = vtanh.pop %v263
    %v270 = vld [vmem:[%s5] sm:$0xff]
    %v271 = vld [vmem:[%s5 + $0x8] sm:$0xff]
    %v272 = vld [vmem:[%s5 + $0x10] sm:$0xff]
    %v273 = vld [vmem:[%s5 + $0x18] sm:$0xff]
    %275 = vset.pattern.permute.xlu0 0
    %276 = vperm.xlu0 %275, %v270
    %v277 = vpop.permute.xlu0 %276
    %280 = vset.pattern.permute.xlu0 0
    %281 = vperm.xlu0 %280, %v271
    %v282 = vpop.permute.xlu0 %281
    %285 = vset.pattern.permute.xlu0 0
    %286 = vperm.xlu0 %285, %v272
    %v287 = vpop.permute.xlu0 %286
    %290 = vset.pattern.permute.xlu0 0
    %291 = vperm.xlu0 %290, %v273
    %v292 = vpop.permute.xlu0 %291
    %v294 = vmul.f32 %v277, %v266
    %v295 = vmul.f32 %v282, %v267
    %v296 = vmul.f32 %v287, %v268
    %v297 = vmul.f32 %v292, %v269
    %v298 = vadd.f32 %v294, %v295
    %v299 = vadd.f32 %v298, %v296
    %v300 = vadd.f32 %v299, %v297
    %v301 = vrot.slane %v300, 4
    %v302 = vadd.f32 %v300, %v301
    %v303 = vrot.slane %v302, 2
    %v304 = vadd.f32 %v302, %v303
    %v305 = vrot.slane %v304, 1
    %v306 = vadd.f32 %v304, %v305
    %v307 = vld [vmem:[#allocation2] sm:$0x1]
    %309 = vset.pattern.permute.xlu0 0
    %310 = vperm.xlu0 %309, %v307
    %v311 = vpop.permute.xlu0 %310
    %v313 = vlaneseq
    %v314 = vshrl.u32 %v313, 7
    %v315 = vsub.s32 0, %v314
    %v316 = vrot.slane %v311, %v315
    %v317 = vadd.f32 %v306, %v316
    %v318 = vxor.u32 %v317, 2147483648
    %v319 = vmul.f32 %v318, 1.442695
    %v320 = vpow.pop %v319
    %v321 = vadd.f32 %v320, 1.0
    %v322 = vrcp.pop %v321
    %v323 = vmul.f32 1.0, %v322
    %324 = vst [vmem:[#allocation3] sm:$0x1] %v323
    // Predicated region
    $region30: #{tpu_custom_call.1} parent=1 // pred_check
      _
    $region31: #{tpu_custom_call.1} parent=1 // pred_check_branch
      %326 = sbr.rel (0) target = $region33
    $region32: #{tpu_custom_call.1} parent=1 // pred_region
      %s328 = ssub.s32 16, 16
      %329 = vsyncadd [#allocation4], %s328
      %s331 = sshll.u32 [#allocation3], 4
      %s332 = int_to_ptr.vmem [resolvable:$true] %s331
      %334 = dma.vmem_to_hbm [thread:$0]  %s332, 16, %s7, [#allocation4]
    $region33: #{tpu_custom_call.1} parent=1 // pred_fallthru
      _
    // Predicated region
    $region34: #{tpu_custom_call.1} parent=1 // pred_check
      _
    $region35: #{tpu_custom_call.1} parent=1 // pred_check_branch
      %336 = sbr.rel (0) target = $region37
    $region36: #{tpu_custom_call.1} parent=1 // pred_region
      %337 = dma.done [#allocation4], 16
    $region37: #{tpu_custom_call.1} parent=1 // pred_fallthru
      _
    %338 = vsyncpa [#allocation4], 1

</llo_original>
